<compile_context>
chip_gen: v6e
topology: v6e:2x2x1
jax: 0.10.0
libtpu: 0.0.40
codegen_flags: <defaults>
</compile_context>

<pallas_src>
import jax
import jax.numpy as jnp
from jax.experimental import pallas as pl
from jax.experimental.pallas import tpu as pltpu

_LANE = 128
_MAX_TILE_T = 65536          # lanes per grid step; ~8 MiB/step incl. dbl-buffer
_MIN_PALLAS_ELEMS = 64 * 1024  # below this, plain XLA beats kernel launch cost
_HIGH = jax.lax.Precision.HIGHEST


def _mlp_decoder_kernel(x_ref, wt_ref, b_ref, o_ref):
    # x_ref : (1, C, TT)   input block, time on the 128-lane axis
    # wt_ref: (K, C)       folded (W1 @ W2)^T  -- VMEM-resident across steps
    # b_ref : (K, 1)       folded bias         -- broadcasts over lanes
    # o_ref : (1, K, TT)   lane-dense output block
    x = x_ref[0]                                       # (C, TT)
    n_in = x_ref.shape[1]                              # static (C is tiny)
    # VPU unroll: out[k, t] = b[k] + sum_c w[k, c] * x[c, t]  (exact fp32,
    # no MXU padding/passes; a few hundred VALU ops per tile).
    acc = b_ref[...] + wt_ref[:, 0:1] * x[0:1, :]      # (K, TT)
    for c in range(1, n_in):                           # static Python unroll
        acc = acc + wt_ref[:, c:c + 1] * x[c:c + 1, :]
    o_ref[0] = acc.astype(o_ref.dtype)


def mlp_decoder(x, w1, b1, w2, b2, *, output_layout="btk",
                use_pallas=None, max_tile_t=_MAX_TILE_T):
    """MLPDecoder forward.

    x: (B, C, T) -> (B, T, n_classes) for output_layout="btk" (PyTorch
    semantics), or (B, n_classes, T) for output_layout="bkt" (lane-dense,
    avoids the final transpose pass over HBM).
    """
    B, C, T = x.shape
    hidden = w1.shape[1]
    n_classes = w2.shape[1]
    assert w1.shape == (C, hidden) and b1.shape == (hidden,)
    assert w2.shape == (hidden, n_classes) and b2.shape == (n_classes,)
    assert output_layout in ("btk", "bkt")

    # Fold the two Linears (valid ONLY because there is no activation between
    # fc1 and fc3 in the reference module).  HIGHEST precision ~ fp32.
    w_folded = jnp.dot(w1, w2, precision=_HIGH)            # (C, K)
    b_folded = jnp.dot(b1, w2, precision=_HIGH) + b2       # (K,)
    wt = jnp.transpose(w_folded)                           # (K, C)
    b2d = b_folded.reshape(n_classes, 1)                   # lane-broadcastable

    if use_pallas is None:
        use_pallas = x.size >= _MIN_PALLAS_ELEMS

    if not use_pallas:
        # Tiny-problem fallback: kernel launch + per-step overhead would
        # exceed the whole workload.
        out_bkt = (jnp.einsum("kc,bct->bkt", wt, x, precision=_HIGH)
                   + b2d[None, :, :])
    else:
        # Lane-dense tiling along T.  Full-extent last dim is always legal;
        # otherwise the tile must be a multiple of 128 and Pallas masks the
        # trailing edge block (no jnp.pad, no extra HBM pass).
        if T <= max_tile_t:
            tile_t = T
        else:
            tile_t = max(_LANE, (max_tile_t // _LANE) * _LANE)

        grid = (B, pl.cdiv(T, tile_t))

        out_bkt = pl.pallas_call(
            _mlp_decoder_kernel,
            out_shape=jax.ShapeDtypeStruct((B, n_classes, T), x.dtype),
            grid_spec=pltpu.PrefetchScalarGridSpec(
                num_scalar_prefetch=0,
                grid=grid,
                in_specs=[
                    pl.BlockSpec((1, C, tile_t), lambda b, t: (b, 0, t)),
                    pl.BlockSpec((n_classes, C), lambda b, t: (0, 0)),
                    pl.BlockSpec((n_classes, 1), lambda b, t: (0, 0)),
                ],
                out_specs=pl.BlockSpec((1, n_classes, tile_t),
                                       lambda b, t: (b, 0, t)),
            ),
            compiler_params=pltpu.CompilerParams(
                dimension_semantics=("parallel", "parallel"),
            ),
        )(x, wt, b2d)

    if output_layout == "bkt":
        return out_bkt
    # (B, K, T) -> (B, T, K): small result, XLA handles the layout change.
    return jnp.transpose(out_bkt, (0, 2, 1))


def init_params(key, n_channels, n_classes, hidden=64, dtype=jnp.float32):
    """Deterministic PyTorch-style uniform init for the two Linear layers."""
    k1, k2, k3, k4 = jax.random.split(key, 4)
    bound1 = 1.0 / (n_channels ** 0.5)
    bound2 = 1.0 / (hidden ** 0.5)
    # Stored as (in_features, out_features) so the math is x @ W directly.
    w1 = jax.random.uniform(k1, (n_channels, hidden), dtype, -bound1, bound1)
    b1 = jax.random.uniform(k2, (hidden,), dtype, -bound1, bound1)
    w2 = jax.random.uniform(k3, (hidden, n_classes), dtype, -bound2, bound2)
    b2 = jax.random.uniform(k4, (n_classes,), dtype, -bound2, bound2)
    return w1, b1, w2, b2


def _reference(x, w1, b1, w2, b2):
    h = jnp.einsum("bct,ch->bth", x, w1, precision=_HIGH) + b1
    return jnp.einsum("bth,hk->btk", h, w2, precision=_HIGH) + b2


if __name__ == "__main__":
    B, C, T = 2, 4, 16          # batch, n_channels, n_time_steps
    n_classes, hidden = 3, 64

    key = jax.random.PRNGKey(0)
    kx, kp = jax.random.split(key)
    x = jax.random.normal(kx, (B, C, T), dtype=jnp.float32)
    w1, b1, w2, b2 = init_params(kp, C, n_classes, hidden)

    # Force the Pallas path even at this tiny size so the kernel is exercised.
    out = jax.block_until_ready(mlp_decoder(x, w1, b1, w2, b2, use_pallas=True))
    assert out.shape == (B, T, n_classes), out.shape
    ref = _reference(x, w1, b1, w2, b2)
    assert jnp.allclose(out, ref, atol=1e-4, rtol=1e-4), \
        float(jnp.max(jnp.abs(out - ref)))

    # Exercise the multi-block grid, the Pallas edge-block masking path
    # (T % tile_t != 0, no jnp.pad), and the class-major fast-output layout,
    # by shrinking the tile cap so shapes stay small.
    for T2, cap in ((256, 128), (600, 256)):
        x2 = jax.random.normal(jax.random.PRNGKey(1), (B, C, T2),
                               dtype=jnp.float32)
        ref2 = _reference(x2, w1, b1, w2, b2)

        out2 = jax.block_until_ready(
            mlp_decoder(x2, w1, b1, w2, b2, use_pallas=True, max_tile_t=cap))
        assert out2.shape == (B, T2, n_classes), out2.shape
        assert jnp.allclose(out2, ref2, atol=1e-4, rtol=1e-4), \
            float(jnp.max(jnp.abs(out2 - ref2)))

        out2_kt = jax.block_until_ready(
            mlp_decoder(x2, w1, b1, w2, b2, use_pallas=True, max_tile_t=cap,
                        output_layout="bkt"))
        assert out2_kt.shape == (B, n_classes, T2), out2_kt.shape
        assert jnp.allclose(jnp.transpose(out2_kt, (0, 2, 1)), ref2,
                            atol=1e-4, rtol=1e-4)

    print("KERNEL_OK")
</pallas_src>

<mosaic_0001>
module attributes {stable_mosaic.version = 11 : i64} {
  func.func @_mlp_decoder_kernel(%arg0: i32, %arg1: i32, %arg2: memref<1x4x16xf32, #tpu.memory_space<vmem>>, %arg3: memref<3x4xf32, #tpu.memory_space<vmem>>, %arg4: memref<3x1xf32, #tpu.memory_space<vmem>>, %arg5: memref<1x3x16xf32, #tpu.memory_space<vmem>>) attributes {dimension_semantics = [#tpu.dimension_semantics<parallel>, #tpu.dimension_semantics<parallel>], iteration_bounds = array<i64: 2, 1>, scalar_prefetch = 0 : i64, scratch_operands = 0 : i64, tpu.core_type = #tpu.core_type<tc>, window_params = [{transform_indices = @transform_0, window_bounds = array<i64: 1, 4, 16>}, {pipeline_mode = #tpu.pipeline_mode<synchronous>, transform_indices = @transform_1, window_bounds = array<i64: 3, 4>}, {pipeline_mode = #tpu.pipeline_mode<synchronous>, transform_indices = @transform_2, window_bounds = array<i64: 3, 1>}, {transform_indices = @transform_3, window_bounds = array<i64: 1, 3, 16>}]} {
    %c0 = arith.constant 0 : index
    %c0_0 = arith.constant 0 : index
    %c0_1 = arith.constant 0 : index
    %0 = vector.load %arg2[%c0, %c0_0, %c0_1] : memref<1x4x16xf32, #tpu.memory_space<vmem>>, vector<1x4x16xf32>
    %1 = vector.shape_cast %0 : vector<1x4x16xf32> to vector<4x16xf32>
    %c0_2 = arith.constant 0 : index
    %c0_3 = arith.constant 0 : index
    %2 = vector.load %arg4[%c0_2, %c0_3] : memref<3x1xf32, #tpu.memory_space<vmem>>, vector<3x1xf32>
    %c0_4 = arith.constant 0 : index
    %c0_5 = arith.constant 0 : index
    %3 = vector.load %arg3[%c0_4, %c0_5] : memref<3x4xf32, #tpu.memory_space<vmem>>, vector<3x1xf32>
    %4 = vector.extract_strided_slice %1 {offsets = [0, 0], sizes = [1, 16], strides = [1, 1]} : vector<4x16xf32> to vector<1x16xf32>
    %5 = vector.broadcast %3 : vector<3x1xf32> to vector<3x16xf32>
    %6 = vector.broadcast %4 : vector<1x16xf32> to vector<3x16xf32>
    %7 = arith.mulf %5, %6 : vector<3x16xf32>
    %8 = vector.broadcast %2 : vector<3x1xf32> to vector<3x16xf32>
    %9 = arith.addf %8, %7 : vector<3x16xf32>
    %c0_6 = arith.constant 0 : index
    %c1 = arith.constant 1 : index
    %10 = vector.load %arg3[%c0_6, %c1] : memref<3x4xf32, #tpu.memory_space<vmem>>, vector<3x1xf32>
    %11 = vector.extract_strided_slice %1 {offsets = [1, 0], sizes = [1, 16], strides = [1, 1]} : vector<4x16xf32> to vector<1x16xf32>
    %12 = vector.broadcast %10 : vector<3x1xf32> to vector<3x16xf32>
    %13 = vector.broadcast %11 : vector<1x16xf32> to vector<3x16xf32>
    %14 = arith.mulf %12, %13 : vector<3x16xf32>
    %15 = arith.addf %9, %14 : vector<3x16xf32>
    %c0_7 = arith.constant 0 : index
    %c2 = arith.constant 2 : index
    %16 = vector.load %arg3[%c0_7, %c2] : memref<3x4xf32, #tpu.memory_space<vmem>>, vector<3x1xf32>
    %17 = vector.extract_strided_slice %1 {offsets = [2, 0], sizes = [1, 16], strides = [1, 1]} : vector<4x16xf32> to vector<1x16xf32>
    %18 = vector.broadcast %16 : vector<3x1xf32> to vector<3x16xf32>
    %19 = vector.broadcast %17 : vector<1x16xf32> to vector<3x16xf32>
    %20 = arith.mulf %18, %19 : vector<3x16xf32>
    %21 = arith.addf %15, %20 : vector<3x16xf32>
    %c0_8 = arith.constant 0 : index
    %c3 = arith.constant 3 : index
    %22 = vector.load %arg3[%c0_8, %c3] : memref<3x4xf32, #tpu.memory_space<vmem>>, vector<3x1xf32>
    %23 = vector.extract_strided_slice %1 {offsets = [3, 0], sizes = [1, 16], strides = [1, 1]} : vector<4x16xf32> to vector<1x16xf32>
    %24 = vector.broadcast %22 : vector<3x1xf32> to vector<3x16xf32>
    %25 = vector.broadcast %23 : vector<1x16xf32> to vector<3x16xf32>
    %26 = arith.mulf %24, %25 : vector<3x16xf32>
    %27 = arith.addf %21, %26 : vector<3x16xf32>
    %c0_9 = arith.constant 0 : index
    %c0_10 = arith.constant 0 : index
    %c0_11 = arith.constant 0 : index
    %28 = vector.load %arg5[%c0_9, %c0_10, %c0_11] : memref<1x3x16xf32, #tpu.memory_space<vmem>>, vector<1x3x16xf32>
    %29 = vector.shape_cast %28 : vector<1x3x16xf32> to vector<3x16xf32>
    %30 = vector.shape_cast %27 : vector<3x16xf32> to vector<1x3x16xf32>
    tpu.vector_store %arg5[%c0_9, %c0_10, %c0_11], %30 {strides = array<i32>} : memref<1x3x16xf32, #tpu.memory_space<vmem>>, vector<1x3x16xf32>,
    return
  }
  func.func @transform_0(%arg0: i32, %arg1: i32) -> (i32, i32, i32) {
    %c0_i32 = arith.constant 0 : i32
    %c0_i32_0 = arith.constant 0 : i32
    return %arg0, %c0_i32, %arg1 : i32, i32, i32
  }
  func.func @transform_1(%arg0: i32, %arg1: i32) -> (i32, i32) {
    %c0_i32 = arith.constant 0 : i32
    %c0_i32_0 = arith.constant 0 : i32
    %c0_i32_1 = arith.constant 0 : i32
    return %c0_i32, %c0_i32_0 : i32, i32
  }
  func.func @transform_2(%arg0: i32, %arg1: i32) -> (i32, i32) {
    %c0_i32 = arith.constant 0 : i32
    %c0_i32_0 = arith.constant 0 : i32
    %c0_i32_1 = arith.constant 0 : i32
    return %c0_i32, %c0_i32_0 : i32, i32
  }
  func.func @transform_3(%arg0: i32, %arg1: i32) -> (i32, i32, i32) {
    %c0_i32 = arith.constant 0 : i32
    %c0_i32_0 = arith.constant 0 : i32
    return %arg0, %c0_i32, %arg1 : i32, i32, i32
  }
}

</mosaic_0001>

<llo_original>
// kernel: tpu_custom_call.1
$region0: #{tpu_custom_call.1}
  #allocation0 [shape = 'u32[]', space=smem, size = 0x4, offset = 0x4, fixed_abs, tag = 'smem constant byte address 0x4 - core index']
  #allocation1 [shape = 'u32[144,128]{1,0:T(1,128)}', space=vmem, size = 0x12000, scoped, tag = 'internal scratch']
  %s0 = inlined_call_operand.hbm [shape: f32[2,4,16], index: 0, kind: input, shape index: {}]
  %s1 = inlined_call_operand.vmem [shape: f32[3,4], index: 1, kind: input, shape index: {}]
  %s2 = inlined_call_operand.vmem [shape: f32[3,1], index: 2, kind: input, shape index: {}]
  %s3 = inlined_call_operand.vmem [shape: f32[2,3,16], index: 3, kind: output, shape index: {}]
  %s4 = sld [smem:[#allocation0]]
  $region49: #{tpu_custom_call.1} parent=0
    _
  %s6 = ssub.s32 1, %s4
  %s7 = scalar_select 0, %s6, %s4
  $region1: #{tpu_custom_call.1} parent=0
    #allocation2 [shape = 'u8[4096]{0}', space=vmem, size = 0x1000, scoped, tag = 'input window, operand 0']
    #allocation3 [shape = 's32[2]{0}', space=sflag, size = 0x8, scoped, tag = 'scoped memory for tpu_custom_call.1']
    %8 = vsyncpa [#allocation3], 0
    %s9 = scalar_lea.sflag [#allocation3], 1
    %10 = vsyncpa %s9, 0
    loop: start=0, step=1, limit=4
    $region2: #{tpu_custom_call.1} parent=1 // loop_pre_header
      _
    $region3: #{tpu_custom_call.1} parent=1 // loop_header
      %s12 = sphi 0, %s16
      %p13 = scmp.ge.s32.totalorder %s12, 4
      %s19 = sphi 0, %s31
      %s20 = sphi 0, %s27
      %s21 = sphi 0, %s19
      %s22 = sphi 0, %s20
      %s23 = sphi 0, %s21
      %s24 = sphi 0, %s22
      %s36 = sphi 0, %s38
      %s39 = sphi 0, %s36
      %s40 = sphi 0, %s39
      %s56 = sphi 0, %s40
      %s60 = sphi 0, %s60
      %s62 = sphi 0, %s60
      %s63 = sphi 0, %s62
      %s77 = sphi 0, %s63
      %s81 = sphi 0, %s81
      %s83 = sphi 0, %s81
      %s84 = sphi 0, %s83
      %s98 = sphi 0, %s84
      %s106 = sphi 0, %s108
      %s109 = sphi 0, %s106
      %s110 = sphi 0, %s109
      %s126 = sphi 0, %s110
    $region4: #{tpu_custom_call.1} parent=1 // loop_header_branch
      %15 = sbr.rel (%p13) target = $region8
    $region5: #{tpu_custom_call.1} parent=1 // loop_body
      %s17 = ssub.s32 %s12, 1
      %s18 = ssub.s32 %s12, 2
      %s25 = sadd.s32 1, %s20
      %p26 = scmp.ge.s32.totalorder %s25, 1
      %s27 = scalar_select %p26, 0, %s25
      %s28 = sadd.s32 1, %s19
      %s29 = scalar_select %p26, %s28, %s19
      %p30 = scmp.ge.s32.totalorder %s29, 2
      %s31 = scalar_select %p30, 0, %s29
      %s32 = ssub.s32 %s19, %s31
      %s33 = ssub.s32 %s20, %s27
      %s34 = sor.u32 %s32, %s33
      %p35 = scmp.eq.s32.totalorder %s34, 0
      %s37 = sadd.s32 %s36, 1
      %s38 = scalar_select %p35, %s36, %s37
      %p41 = pneg %p35
      %p42 = scmp.eq.s32.totalorder %s12, 1
      %p43 = por %p41, %p42
      %p44 = scmp.ne.s32.totalorder %s36, %s39
      %p45 = scmp.eq.s32.totalorder %s12, 0
      %p46 = por %p44, %p45
      %p47 = scmp.ne.s32.totalorder %s36, %s39
      %p48 = scmp.eq.s32.totalorder %s17, 1
      %p49 = por %p47, %p48
      %p50 = scmp.ne.s32.totalorder %s39, %s40
      %p51 = scmp.eq.s32.totalorder %s17, 0
      %p52 = por %p50, %p51
      %p53 = scmp.ne.s32.totalorder %s39, %s40
      %p54 = scmp.eq.s32.totalorder %s18, 1
      %p55 = por %p53, %p54
      %p57 = scmp.ne.s32.totalorder %s40, %s56
      %p58 = scmp.eq.s32.totalorder %s18, 0
      %p59 = por %p57, %p58
      %s61 = sadd.s32 %s60, 1
      %p64 = scmp.eq.s32.totalorder %s12, 1
      %p65 = scmp.ne.s32.totalorder %s60, %s62
      %p66 = scmp.eq.s32.totalorder %s12, 0
      %p67 = por %p65, %p66
      %p68 = scmp.ne.s32.totalorder %s60, %s62
      %p69 = scmp.eq.s32.totalorder %s17, 1
      %p70 = por %p68, %p69
      %p71 = scmp.ne.s32.totalorder %s62, %s63
      %p72 = scmp.eq.s32.totalorder %s17, 0
      %p73 = por %p71, %p72
      %p74 = scmp.ne.s32.totalorder %s62, %s63
      %p75 = scmp.eq.s32.totalorder %s18, 1
      %p76 = por %p74, %p75
      %p78 = scmp.ne.s32.totalorder %s63, %s77
      %p79 = scmp.eq.s32.totalorder %s18, 0
      %p80 = por %p78, %p79
      %s82 = sadd.s32 %s81, 1
      %p85 = scmp.eq.s32.totalorder %s12, 1
      %p86 = scmp.ne.s32.totalorder %s81, %s83
      %p87 = scmp.eq.s32.totalorder %s12, 0
      %p88 = por %p86, %p87
      %p89 = scmp.ne.s32.totalorder %s81, %s83
      %p90 = scmp.eq.s32.totalorder %s17, 1
      %p91 = por %p89, %p90
      %p92 = scmp.ne.s32.totalorder %s83, %s84
      %p93 = scmp.eq.s32.totalorder %s17, 0
      %p94 = por %p92, %p93
      %p95 = scmp.ne.s32.totalorder %s83, %s84
      %p96 = scmp.eq.s32.totalorder %s18, 1
      %p97 = por %p95, %p96
      %p99 = scmp.ne.s32.totalorder %s84, %s98
      %p100 = scmp.eq.s32.totalorder %s18, 0
      %p101 = por %p99, %p100
      %s102 = ssub.s32 %s19, %s31
      %s103 = ssub.s32 %s20, %s27
      %s104 = sor.u32 %s102, %s103
      %p105 = scmp.eq.s32.totalorder %s104, 0
      %s107 = sadd.s32 %s106, 1
      %s108 = scalar_select %p105, %s106, %s107
      %p111 = pneg %p105
      %p112 = scmp.eq.s32.totalorder %s12, 1
      %p113 = por %p111, %p112
      %p114 = scmp.ne.s32.totalorder %s106, %s109
      %p115 = scmp.eq.s32.totalorder %s12, 0
      %p116 = por %p114, %p115
      %p117 = scmp.ne.s32.totalorder %s106, %s109
      %p118 = scmp.eq.s32.totalorder %s17, 1
      %p119 = por %p117, %p118
      %p120 = scmp.ne.s32.totalorder %s109, %s110
      %p121 = scmp.eq.s32.totalorder %s17, 0
      %p122 = por %p120, %p121
      %p123 = scmp.ne.s32.totalorder %s109, %s110
      %p124 = scmp.eq.s32.totalorder %s18, 1
      %p125 = por %p123, %p124
      %p127 = scmp.ne.s32.totalorder %s110, %s126
      %p128 = scmp.eq.s32.totalorder %s18, 0
      %p129 = por %p127, %p128
      %p130 = scmp.le.s32.totalorder 1, %s12
      %p131 = scmp.lt.s32.totalorder %s12, 3
      %p132 = pnand %p130, %p131
      %p133 = pneg %p132
      // Predicated region
      $region9: #{tpu_custom_call.1} parent=5 // pred_check
        _
      $region10: #{tpu_custom_call.1} parent=5 // pred_check_branch
        %135 = sbr.rel (%p132) target = $region12
      $region11: #{tpu_custom_call.1} parent=5 // pred_region
        %s136 = ssub.s32 %s12, 1
        // Predicated region
        $region13: #{tpu_custom_call.1} parent=11 // pred_check
          %p137 = pneg %p73
        $region14: #{tpu_custom_call.1} parent=11 // pred_check_branch
          %139 = sbr.rel (%p137) target = $region16
        $region15: #{tpu_custom_call.1} parent=11 // pred_region
          _
        $region16: #{tpu_custom_call.1} parent=11 // pred_fallthru
          _
        // Predicated region
        $region17: #{tpu_custom_call.1} parent=11 // pred_check
          %p140 = pneg %p94
        $region18: #{tpu_custom_call.1} parent=11 // pred_check_branch
          %142 = sbr.rel (%p140) target = $region20
        $region19: #{tpu_custom_call.1} parent=11 // pred_region
          _
        $region20: #{tpu_custom_call.1} parent=11 // pred_fallthru
          _
      $region12: #{tpu_custom_call.1} parent=5 // pred_fallthru
        _
      %p143 = scmp.lt.s32.totalorder %s12, 2
      // Predicated region
      $region21: #{tpu_custom_call.1} parent=5 // pred_check
        %p144 = pneg %p143
      $region22: #{tpu_custom_call.1} parent=5 // pred_check_branch
        %146 = sbr.rel (%p144) target = $region24
      $region23: #{tpu_custom_call.1} parent=5 // pred_region
        // Predicated region
        $region25: #{tpu_custom_call.1} parent=23 // pred_check
          %p147 = pneg %p46
        $region26: #{tpu_custom_call.1} parent=23 // pred_check_branch
          %149 = sbr.rel (%p147) target = $region28
        $region27: #{tpu_custom_call.1} parent=23 // pred_region
          %s150 = sand.u32 %s36, 1
          %s151 = scalar_lea.sflag [#allocation3], %s150
          %s152 = sand.u32 %s36, 1
          %s153 = smul.addr %s152, 4
          %s154 = scalar_lea.vmem [#allocation2], %s153
          %s156 = ssub.s32 64, 64
          %157 = vsyncadd %s151, %s156
          %s158 = sadd.s32 %s20, %s19
          %s159 = smul.addr %s158, 64
          %s160 = scalar_lea.hbm %s0, %s159
          %s162 = sshll.u32 %s154, 4
          %s163 = int_to_ptr.vmem [resolvable:$true] %s162
          %165 = dma.hbm_to_vmem [thread:$0]  %s160, 64, %s163, %s151
        $region28: #{tpu_custom_call.1} parent=23 // pred_fallthru
          _
      $region24: #{tpu_custom_call.1} parent=5 // pred_fallthru
        _
      %p166 = scmp.le.s32.totalorder 1, %s12
      %p167 = scmp.lt.s32.totalorder %s12, 3
      %p168 = pnand %p166, %p167
      %p169 = pneg %p168
      // Predicated region
      $region29: #{tpu_custom_call.1} parent=5 // pred_check
        _
      $region30: #{tpu_custom_call.1} parent=5 // pred_check_branch
        %171 = sbr.rel (%p168) target = $region32
      $region31: #{tpu_custom_call.1} parent=5 // pred_region
        %s172 = ssub.s32 %s12, 1
        %s173 = sand.u32 %s39, 1
        %s174 = scalar_lea.sflag [#allocation3], %s173
        %s175 = sand.u32 %s39, 1
        %s176 = smul.addr %s175, 4
        %s177 = scalar_lea.vmem [#allocation2], %s176
        // Predicated region
        $region33: #{tpu_custom_call.1} parent=31 // pred_check
          %p178 = pneg %p52
        $region34: #{tpu_custom_call.1} parent=31 // pred_check_branch
          %180 = sbr.rel (%p178) target = $region36
        $region35: #{tpu_custom_call.1} parent=31 // pred_region
          %181 = dma.done %s174, 64
        $region36: #{tpu_custom_call.1} parent=31 // pred_fallthru
          _
        %s182 = sand.u32 %s39, 1
        %s183 = scalar_lea.sflag [#allocation3], %s182
        %s184 = sand.u32 %s39, 1
        %s185 = smul.addr %s184, 4
        %s186 = scalar_lea.vmem [#allocation2], %s185
        %p187 = pneg %p52
        %p188 = pneg %p49
        %p189 = pneg %p73
        %p190 = pneg %p70
        %p191 = pneg %p94
        %p192 = pneg %p91
        %p193 = pneg %p122
        %p194 = pneg %p119
        %p195 = scmp.lt.s32.totalorder %s21, 1
        %s196 = scalar_select %p195, %s21, 1
        %p197 = scmp.lt.s32.totalorder %s22, 0
        %s198 = scalar_select %p197, %s22, 0
        %s199 = sadd.s32 %s198, %s196
        %s200 = smul.addr %s199, 4
        %s201 = scalar_lea.vmem %s3, %s200
        %p202 = scmp.lt.s32.totalorder %s21, 1
        %s203 = scalar_select %p202, %s21, 1
        %p204 = scmp.lt.s32.totalorder %s22, 0
        %s205 = scalar_select %p204, %s22, 0
        %s206 = sadd.s32 %s205, %s203
        %s207 = smul.addr %s206, 4
        %s208 = scalar_lea.vmem %s3, %s207
        %v209 = vld [vmem:[%s177] sm:$0xf]
        %v210 = vld [vmem:[%s2] sm:$0x7]
        %v211 = vld [vmem:[%s1] sm:$0x7]
        %213 = vset.pattern.permute.xlu0 0
        %214 = vperm.xlu0 %213, %v211
        %v215 = vpop.permute.xlu0 %214
        %v217 = vlaneseq
        %v218 = vshrl.u32 %v217, 7
        %v219 = vsub.s32 0, %v218
        %v220 = vrot.slane %v209, %v219
        %v221 = vmul.f32 %v215, %v220
        %223 = vset.pattern.permute.xlu0 0
        %224 = vperm.xlu0 %223, %v210
        %v225 = vpop.permute.xlu0 %224
        %v227 = vadd.f32 %v225, %v221
        %228 = vset.pattern.permute.xlu0 1
        %229 = vperm.xlu0 %228, %v211
        %v230 = vpop.permute.xlu0 %229
        %v232 = vlaneseq
        %v233 = vshrl.u32 %v232, 7
        %v234 = vsub.s32 1, %v233
        %v235 = vrot.slane %v209, %v234
        %v236 = vmul.f32 %v230, %v235
        %v237 = vadd.f32 %v227, %v236
        %238 = vset.pattern.permute.xlu0 2
        %239 = vperm.xlu0 %238, %v211
        %v240 = vpop.permute.xlu0 %239
        %v242 = vlaneseq
        %v243 = vshrl.u32 %v242, 7
        %v244 = vsub.s32 2, %v243
        %v245 = vrot.slane %v209, %v244
        %v246 = vmul.f32 %v240, %v245
        %v247 = vadd.f32 %v237, %v246
        %248 = vset.pattern.permute.xlu0 3
        %249 = vperm.xlu0 %248, %v211
        %v250 = vpop.permute.xlu0 %249
        %v252 = vlaneseq
        %v253 = vshrl.u32 %v252, 7
        %v254 = vsub.s32 3, %v253
        %v255 = vrot.slane %v209, %v254
        %v256 = vmul.f32 %v250, %v255
        %v257 = vadd.f32 %v247, %v256
        %vm258 = vcmask 124928
        %259 = vst.msk [vmem:[%s208] sm:$0x7] %vm258, %v257
        %p260 = scmp.lt.s32.totalorder %s21, 1
        %s261 = scalar_select %p260, %s21, 1
        %p262 = scmp.lt.s32.totalorder %s22, 0
        %s263 = scalar_select %p262, %s22, 0
        %s264 = sadd.s32 %s263, %s261
        %s265 = smul.addr %s264, 4
        %s266 = scalar_lea.vmem %s3, %s265
        // Predicated region
        $region37: #{tpu_custom_call.1} parent=31 // pred_check
          %p267 = pneg %p119
        $region38: #{tpu_custom_call.1} parent=31 // pred_check_branch
          %269 = sbr.rel (%p267) target = $region40
        $region39: #{tpu_custom_call.1} parent=31 // pred_region
          _
        $region40: #{tpu_custom_call.1} parent=31 // pred_fallthru
          _
      $region32: #{tpu_custom_call.1} parent=5 // pred_fallthru
        _
      %p270 = scmp.le.s32.totalorder 2, %s12
      // Predicated region
      $region41: #{tpu_custom_call.1} parent=5 // pred_check
        %p271 = pneg %p270
      $region42: #{tpu_custom_call.1} parent=5 // pred_check_branch
        %273 = sbr.rel (%p271) target = $region44
      $region43: #{tpu_custom_call.1} parent=5 // pred_region
        %s274 = ssub.s32 %s12, 2
        // Predicated region
        $region45: #{tpu_custom_call.1} parent=43 // pred_check
          %p275 = pneg %p125
        $region46: #{tpu_custom_call.1} parent=43 // pred_check_branch
          %277 = sbr.rel (%p275) target = $region48
        $region47: #{tpu_custom_call.1} parent=43 // pred_region
          %p278 = scmp.lt.s32.totalorder %s23, 1
          %s279 = scalar_select %p278, %s23, 1
          %p280 = scmp.lt.s32.totalorder %s24, 0
          %s281 = scalar_select %p280, %s24, 0
          %s282 = sadd.s32 %s281, %s279
          %s283 = smul.addr %s282, 4
          %s284 = scalar_lea.vmem %s3, %s283
        $region48: #{tpu_custom_call.1} parent=43 // pred_fallthru
          _
      $region44: #{tpu_custom_call.1} parent=5 // pred_fallthru
        _
    $region6: #{tpu_custom_call.1} parent=1 // loop_footer
      %s16 = sadd.s32 1, %s12
    $region7: #{tpu_custom_call.1} parent=1 // loop_footer_branch
      %11 = sbr.rel target = $region3
    $region8: #{tpu_custom_call.1} parent=1 // loop_exit
      _
    %285 = vsyncpa [#allocation3], 1
    %s286 = scalar_lea.sflag [#allocation3], 1
    %287 = vsyncpa %s286, 1

</llo_original>
